<compile_context>
chip_gen: v5e
topology: v5e:2x2
jax: 0.10.0
libtpu: 0.0.40
codegen_flags: <defaults>
</compile_context>

<pallas_src>
import functools
import math

import jax
import jax.numpy as jnp
from jax.experimental import pallas as pl
from jax.experimental.pallas import tpu as pltpu

_LANES = 128
_CHUNK_ROWS = 64            # rows processed per inner step (bounds live vregs)
_FUSED_TILE_ROWS = 512      # rows of 128 lanes per fused block (~2.5 MiB @ f_in=10)
_MSE_BLOCK_BYTES = 2 << 20  # ~2 MiB per operand block in the standalone MSE


def _cdiv(a, b):
    return -(-a // b)


# ----------------------------------------------------------------------------
# Shared helper: weighted frame mix streamed chunk-by-chunk from the refs.
# ----------------------------------------------------------------------------
def _chunk_bounds(tile_rows):
    chunk = _CHUNK_ROWS if tile_rows >= _CHUNK_ROWS else tile_rows
    return [(c0, min(chunk, tile_rows - c0)) for c0 in range(0, tile_rows, chunk)]


# ----------------------------------------------------------------------------
# Fused kernel: linear frame prediction + MSE accumulation in one pass.
# ----------------------------------------------------------------------------
def _fused_loss_kernel(w_ref, x_ref, t_ref, o_ref, acc_ref, *,
                       f_in, f_out, inv_n, rows, tile_rows, n_row_tiles):
    s = pl.program_id(1)
    k = pl.program_id(2)
    tiles_per_split = pl.num_programs(2)

    @pl.when(k == 0)
    def _():
        acc_ref[...] = jnp.zeros_like(acc_ref)

    row_blk = s * tiles_per_split + k
    bounds = _chunk_bounds(tile_rows)

    def accumulate(masked):
        for c0, csz in bounds:
            # Stream one input frame chunk at a time (i-outer / o-inner).
            xi = x_ref[0, 0, pl.ds(c0, csz), :].astype(jnp.float32)
            preds = [w_ref[o, 0] * xi for o in range(f_out)]
            for i in range(1, f_in):
                xi = x_ref[0, i, pl.ds(c0, csz), :].astype(jnp.float32)
                for o in range(f_out):
                    preds[o] = preds[o] + w_ref[o, i] * xi
            if masked:
                local = jax.lax.broadcasted_iota(jnp.int32, (csz, _LANES), 0)
                valid = (row_blk * tile_rows + c0 + local) < rows
            for o in range(f_out):
                diff = preds[o] - t_ref[0, o, pl.ds(c0, csz), :].astype(jnp.float32)
                if masked:
                    diff = jnp.where(valid, diff, 0.0)
                acc_ref[o, pl.ds(c0, csz), :] += (diff * diff) * inv_n

    if rows % tile_rows == 0:
        accumulate(masked=False)          # no mask code traced at all
    else:
        is_tail = row_blk == (n_row_tiles - 1)

        @pl.when(jnp.logical_not(is_tail))
        def _():
            accumulate(masked=False)

        @pl.when(is_tail)
        def _():
            accumulate(masked=True)

    @pl.when(k == tiles_per_split - 1)
    def _():
        o_ref[...] = jnp.reshape(jnp.sum(acc_ref[...]), (1, 1, 1, 1))


def fused_prediction_mse_loss(weights, inputs, target):
    """MSE(pred, target) with pred[b,o] = sum_i w[o,i]*inputs[b,i], fully fused."""
    B, f_in = inputs.shape[:2]
    f_out = target.shape[1]
    d = math.prod(inputs.shape[2:])
    assert math.prod(target.shape[2:]) == d, (inputs.shape, target.shape)
    n_total = B * f_out * d

    x = inputs.reshape(B, f_in, d)
    t = target.reshape(B, f_out, d)
    pad = (-d) % _LANES
    if pad:
        # Zero lane-pad is loss-neutral (pred of zeros == zero target).
        # TODO(synk): lane pad copies the operands once when d % 128 != 0.
        x = jnp.pad(x, ((0, 0), (0, 0), (0, pad)))
        t = jnp.pad(t, ((0, 0), (0, 0), (0, pad)))
    rows = (d + pad) // _LANES
    x = x.reshape(B, f_in, rows, _LANES)
    t = t.reshape(B, f_out, rows, _LANES)

    tile_rows = rows if rows <= _FUSED_TILE_ROWS else _FUSED_TILE_ROWS
    n_row_tiles = _cdiv(rows, tile_rows)
    # Extra parallel axis so v7x megacore can split the reduction range even
    # when B == 1 (no-op on v5e/v6e).
    n_split = 2 if (n_row_tiles >= 2 and n_row_tiles % 2 == 0) else 1
    tiles_per_split = n_row_tiles // n_split

    kernel = functools.partial(
        _fused_loss_kernel, f_in=f_in, f_out=f_out, inv_n=1.0 / float(n_total),
        rows=rows, tile_rows=tile_rows, n_row_tiles=n_row_tiles)

    partials = pl.pallas_call(
        kernel,
        out_shape=jax.ShapeDtypeStruct((B, n_split, 1, 1), jnp.float32),
        grid_spec=pltpu.PrefetchScalarGridSpec(
            num_scalar_prefetch=0,
            grid=(B, n_split, tiles_per_split),
            in_specs=[
                pl.BlockSpec(memory_space=pltpu.MemorySpace.SMEM),   # weights
                pl.BlockSpec((1, f_in, tile_rows, _LANES),
                             lambda b, s, k: (b, 0, s * tiles_per_split + k, 0)),
                pl.BlockSpec((1, f_out, tile_rows, _LANES),
                             lambda b, s, k: (b, 0, s * tiles_per_split + k, 0)),
            ],
            out_specs=pl.BlockSpec((1, 1, 1, 1), lambda b, s, k: (b, s, 0, 0)),
            scratch_shapes=[pltpu.VMEM((f_out, tile_rows, _LANES), jnp.float32)],
        ),
        compiler_params=pltpu.CompilerParams(
            dimension_semantics=("parallel", "parallel", "arbitrary"),
            vmem_limit_bytes=32 * 1024 * 1024),
    )(weights.astype(jnp.float32), x, t)
    # Tiny (B, n_split) combine outside the kernel (also merges core partials).
    return jnp.sum(partials)


# ----------------------------------------------------------------------------
# Standalone prediction kernel (generic / unfused path).
# ----------------------------------------------------------------------------
def _predict_kernel(w_ref, x_ref, o_ref, *, f_in, f_out, tile_rows):
    for c0, csz in _chunk_bounds(tile_rows):
        xi = x_ref[0, 0, pl.ds(c0, csz), :].astype(jnp.float32)
        preds = [w_ref[o, 0] * xi for o in range(f_out)]
        for i in range(1, f_in):
            xi = x_ref[0, i, pl.ds(c0, csz), :].astype(jnp.float32)
            for o in range(f_out):
                preds[o] = preds[o] + w_ref[o, i] * xi
        for o in range(f_out):
            o_ref[0, o, pl.ds(c0, csz), :] = preds[o].astype(o_ref.dtype)


def linear_frame_prediction(weights, inputs_flat):
    """weights: (F_out, F_in); inputs_flat: (B, F_in, D) -> (B, F_out, D)."""
    B, f_in, d = inputs_flat.shape
    f_out = weights.shape[0]
    pad = (-d) % _LANES
    x = inputs_flat
    if pad:
        x = jnp.pad(x, ((0, 0), (0, 0), (0, pad)))
    rows = (d + pad) // _LANES
    x = x.reshape(B, f_in, rows, _LANES)

    tile_rows = rows if rows <= _FUSED_TILE_ROWS else _FUSED_TILE_ROWS
    n_row_tiles = _cdiv(rows, tile_rows)

    kernel = functools.partial(
        _predict_kernel, f_in=f_in, f_out=f_out, tile_rows=tile_rows)
    out = pl.pallas_call(
        kernel,
        # Emit in the input dtype (halves writeback + MSE re-read for bf16).
        out_shape=jax.ShapeDtypeStruct((B, f_out, rows, _LANES), inputs_flat.dtype),
        grid_spec=pltpu.PrefetchScalarGridSpec(
            num_scalar_prefetch=0,
            grid=(B, n_row_tiles),
            in_specs=[
                pl.BlockSpec(memory_space=pltpu.MemorySpace.SMEM),
                pl.BlockSpec((1, f_in, tile_rows, _LANES), lambda b, k: (b, 0, k, 0)),
            ],
            out_specs=pl.BlockSpec((1, f_out, tile_rows, _LANES),
                                   lambda b, k: (b, 0, k, 0)),
        ),
        compiler_params=pltpu.CompilerParams(
            dimension_semantics=("parallel", "parallel"),
            vmem_limit_bytes=32 * 1024 * 1024),
    )(weights.astype(jnp.float32), x)
    out = out.reshape(B, f_out, rows * _LANES)
    return out[:, :, :d] if pad else out


# ----------------------------------------------------------------------------
# Standalone MSE kernel (generic / unfused path), large lane-dense tiles.
# ----------------------------------------------------------------------------
def _mse_kernel(p_ref, t_ref, o_ref, acc_ref, *, rows, tile_rows, n_row_tiles, inv_n):
    s = pl.program_id(0)
    k = pl.program_id(1)

    @pl.when(k == 0)
    def _():
        acc_ref[...] = jnp.zeros_like(acc_ref)

    row_blk = s * pl.num_programs(1) + k

    def add(masked):
        d = p_ref[...].astype(jnp.float32) - t_ref[...].astype(jnp.float32)
        if masked:
            ids = jax.lax.broadcasted_iota(jnp.int32, acc_ref.shape, 0)
            d = jnp.where(ids + row_blk * tile_rows < rows, d, 0.0)
        acc_ref[...] += (d * d) * inv_n

    if rows % tile_rows == 0:
        add(False)
    else:
        is_tail = row_blk == (n_row_tiles - 1)

        @pl.when(jnp.logical_not(is_tail))
        def _():
            add(False)

        @pl.when(is_tail)
        def _():
            add(True)

    @pl.when(k == pl.num_programs(1) - 1)
    def _():
        o_ref[...] = jnp.reshape(jnp.sum(acc_ref[...]), (1, 1, 1))


def mse_loss_pallas(pred, target):
    """mean((pred - target)**2), tiled Pallas reduction (matches nn.MSELoss())."""
    assert pred.shape == target.shape, (pred.shape, target.shape)
    n = pred.size
    p = pred.reshape(-1)
    t = target.reshape(-1)

    lanes = None
    for cand in (1024, 512, 256, 128):
        if n % cand == 0:
            lanes = cand
            break
    if lanes is None:
        # TODO(synk): ragged tail (< 128 elems); zero-pad both operands (diff 0).
        lanes = _LANES
        pad = (-n) % _LANES
        p = jnp.pad(p, (0, pad))
        t = jnp.pad(t, (0, pad))
    rows = p.size // lanes
    p2 = p.reshape(rows, lanes)
    t2 = t.reshape(rows, lanes)

    target_rows = max(8, _MSE_BLOCK_BYTES // (lanes * 4))
    if rows <= target_rows:
        tile_rows = rows
    else:
        tile_rows = (target_rows // 8) * 8
    n_row_tiles = _cdiv(rows, tile_rows)
    n_split = 2 if (n_row_tiles >= 2 and n_row_tiles % 2 == 0) else 1
    tiles_per_split = n_row_tiles // n_split

    kernel = functools.partial(
        _mse_kernel, rows=rows, tile_rows=tile_rows, n_row_tiles=n_row_tiles,
        inv_n=1.0 / float(n))

    out = pl.pallas_call(
        kernel,
        out_shape=jax.ShapeDtypeStruct((n_split, 1, 1), jnp.float32),
        grid_spec=pltpu.PrefetchScalarGridSpec(
            num_scalar_prefetch=0,
            grid=(n_split, tiles_per_split),
            in_specs=[
                pl.BlockSpec((tile_rows, lanes),
                             lambda s, k: (s * tiles_per_split + k, 0)),
                pl.BlockSpec((tile_rows, lanes),
                             lambda s, k: (s * tiles_per_split + k, 0)),
            ],
            out_specs=pl.BlockSpec((1, 1, 1), lambda s, k: (s, 0, 0)),
            scratch_shapes=[pltpu.VMEM((tile_rows, lanes), jnp.float32)],
        ),
        compiler_params=pltpu.CompilerParams(
            dimension_semantics=("parallel", "arbitrary"),
            vmem_limit_bytes=32 * 1024 * 1024),
    )(p2, t2)
    return jnp.sum(out)


# ----------------------------------------------------------------------------
# The module.
# ----------------------------------------------------------------------------
class LinearFramePredictor:
    """Deterministic `prediction_func(inputs, num_label_frames)`: each predicted
    frame is a fixed linear mix of the input frames (VPU; MXU pointless at
    f_out*f_in this small)."""

    def __init__(self, weights):
        self.weights = jnp.asarray(weights, jnp.float32)   # (max_F_out, F_in)

    def __call__(self, inputs, num_label_frames):
        B, f_in = inputs.shape[:2]
        frame_shape = inputs.shape[2:]
        d = math.prod(frame_shape)
        w = self.weights[:num_label_frames]
        pred = linear_frame_prediction(w, inputs.reshape(B, f_in, d))
        return pred.reshape((B, num_label_frames) + frame_shape)


class RecursivePredictionLoss:
    """JAX/Pallas port of the PyTorch RecursivePredictionLoss module."""

    def __init__(self, prediction_func, num_input_frames=10, num_label_frames=1):
        self.prediction_func = prediction_func
        self.num_input_frames = num_input_frames
        self.num_label_frames = num_label_frames

    def __call__(self, inputs, target):
        if isinstance(self.prediction_func, LinearFramePredictor):
            # Fused path: prediction + MSE in one kernel; `pred` never hits HBM.
            w = self.prediction_func.weights[: self.num_label_frames]
            return fused_prediction_mse_loss(w, inputs, target)
        # Generic path: arbitrary prediction_func, then Pallas MSE.
        # TODO(synk): arbitrary injected prediction_func stays user-level JAX.
        predicted_frames = self.prediction_func(inputs, self.num_label_frames)
        return mse_loss_pallas(predicted_frames, target)


if __name__ == "__main__":
    key = jax.random.PRNGKey(0)
    k_in, k_tgt, k_w = jax.random.split(key, 3)

    B, F_in, F_out = 2, 10, 1
    C, H, W = 4, 16, 16

    inputs = jax.random.normal(k_in, (B, F_in, C, H, W), dtype=jnp.float32)
    target = jax.random.normal(k_tgt, (B, F_out, C, H, W), dtype=jnp.float32)
    # Deterministic "learned" frame-mixing weights (synthetic, not a checkpoint).
    weights = jax.random.normal(k_w, (F_out, F_in), dtype=jnp.float32) * 0.1

    predictor = LinearFramePredictor(weights)
    loss_mod = RecursivePredictionLoss(
        predictor, num_input_frames=F_in, num_label_frames=F_out)

    # Fused prediction+MSE path (primary).
    loss = jax.block_until_ready(loss_mod(inputs, target))

    # Generic (unfused) path: standalone predictor kernel + MSE kernel.
    pred = predictor(inputs, F_out)
    loss_unfused = jax.block_until_ready(mse_loss_pallas(pred, target))

    # Pure-JAX reference.
    pred_ref = jnp.einsum("oi,bi...->bo...", weights, inputs)
    loss_ref = jnp.mean((pred_ref - target) ** 2)

    assert jnp.allclose(loss, loss_ref, rtol=1e-5, atol=1e-5), (loss, loss_ref)
    assert jnp.allclose(loss_unfused, loss_ref, rtol=1e-5, atol=1e-5), (
        loss_unfused, loss_ref)

    print("KERNEL_OK")
</pallas_src>

<mosaic_0001>
module attributes {stable_mosaic.version = 11 : i64} {
  func.func @_fused_loss_kernel(%arg0: i32, %arg1: i32, %arg2: i32, %arg3: memref<1x10xf32, #tpu.memory_space<smem>>, %arg4: memref<1x10x8x128xf32, #tpu.memory_space<vmem>>, %arg5: memref<1x1x8x128xf32, #tpu.memory_space<vmem>>, %arg6: memref<1x1x1x1xf32, #tpu.memory_space<vmem>>, %arg7: memref<1x8x128xf32, #tpu.memory_space<vmem>>) attributes {dimension_semantics = [#tpu.dimension_semantics<parallel>, #tpu.dimension_semantics<parallel>, #tpu.dimension_semantics<arbitrary>], iteration_bounds = array<i64: 2, 1, 1>, scalar_prefetch = 0 : i64, scratch_operands = 1 : i64, tpu.core_type = #tpu.core_type<tc>, window_params = [{transform_indices = @transform_0, window_bounds = array<i64: 1, 10>}, {transform_indices = @transform_1, window_bounds = array<i64: 1, 10, 8, 128>}, {transform_indices = @transform_2, window_bounds = array<i64: 1, 1, 8, 128>}, {transform_indices = @transform_3, window_bounds = array<i64: 1, 1, 1, 1>}]} {
    %c0_i32 = arith.constant 0 : i32
    %0 = arith.cmpi eq, %arg2, %c0_i32 : i32
    %1 = arith.extui %0 : i1 to i32
    %c0_i32_0 = arith.constant 0 : i32
    %2 = arith.cmpi ne, %1, %c0_i32_0 : i32
    scf.if %2 {
      %cst_63 = arith.constant 0.000000e+00 : f32
      %77 = vector.broadcast %cst_63 : f32 to vector<1x8x128xf32>
      %c0_64 = arith.constant 0 : index
      %c0_65 = arith.constant 0 : index
      %c0_66 = arith.constant 0 : index
      %78 = vector.load %arg7[%c0_64, %c0_65, %c0_66] : memref<1x8x128xf32, #tpu.memory_space<vmem>>, vector<1x8x128xf32>
      tpu.vector_store %arg7[%c0_64, %c0_65, %c0_66], %77 {strides = array<i32>} : memref<1x8x128xf32, #tpu.memory_space<vmem>>, vector<1x8x128xf32>,
    } else {
    }
    %c0 = arith.constant 0 : index
    %c0_1 = arith.constant 0 : index
    %c0_2 = arith.constant 0 : index
    %c0_3 = arith.constant 0 : index
    %3 = vector.load %arg4[%c0, %c0_1, %c0_2, %c0_3] : memref<1x10x8x128xf32, #tpu.memory_space<vmem>>, vector<1x1x8x128xf32>
    %4 = vector.shape_cast %3 : vector<1x1x8x128xf32> to vector<8x128xf32>
    %c0_4 = arith.constant 0 : index
    %c0_5 = arith.constant 0 : index
    %5 = memref.load %arg3[%c0_4, %c0_5] : memref<1x10xf32, #tpu.memory_space<smem>>
    %6 = vector.broadcast %5 : f32 to vector<8x128xf32>
    %7 = arith.mulf %6, %4 : vector<8x128xf32>
    %c0_6 = arith.constant 0 : index
    %c1 = arith.constant 1 : index
    %c0_7 = arith.constant 0 : index
    %c0_8 = arith.constant 0 : index
    %8 = vector.load %arg4[%c0_6, %c1, %c0_7, %c0_8] : memref<1x10x8x128xf32, #tpu.memory_space<vmem>>, vector<1x1x8x128xf32>
    %9 = vector.shape_cast %8 : vector<1x1x8x128xf32> to vector<8x128xf32>
    %c0_9 = arith.constant 0 : index
    %c1_10 = arith.constant 1 : index
    %10 = memref.load %arg3[%c0_9, %c1_10] : memref<1x10xf32, #tpu.memory_space<smem>>
    %11 = vector.broadcast %10 : f32 to vector<8x128xf32>
    %12 = arith.mulf %11, %9 : vector<8x128xf32>
    %13 = arith.addf %7, %12 : vector<8x128xf32>
    %c0_11 = arith.constant 0 : index
    %c2 = arith.constant 2 : index
    %c0_12 = arith.constant 0 : index
    %c0_13 = arith.constant 0 : index
    %14 = vector.load %arg4[%c0_11, %c2, %c0_12, %c0_13] : memref<1x10x8x128xf32, #tpu.memory_space<vmem>>, vector<1x1x8x128xf32>
    %15 = vector.shape_cast %14 : vector<1x1x8x128xf32> to vector<8x128xf32>
    %c0_14 = arith.constant 0 : index
    %c2_15 = arith.constant 2 : index
    %16 = memref.load %arg3[%c0_14, %c2_15] : memref<1x10xf32, #tpu.memory_space<smem>>
    %17 = vector.broadcast %16 : f32 to vector<8x128xf32>
    %18 = arith.mulf %17, %15 : vector<8x128xf32>
    %19 = arith.addf %13, %18 : vector<8x128xf32>
    %c0_16 = arith.constant 0 : index
    %c3 = arith.constant 3 : index
    %c0_17 = arith.constant 0 : index
    %c0_18 = arith.constant 0 : index
    %20 = vector.load %arg4[%c0_16, %c3, %c0_17, %c0_18] : memref<1x10x8x128xf32, #tpu.memory_space<vmem>>, vector<1x1x8x128xf32>
    %21 = vector.shape_cast %20 : vector<1x1x8x128xf32> to vector<8x128xf32>
    %c0_19 = arith.constant 0 : index
    %c3_20 = arith.constant 3 : index
    %22 = memref.load %arg3[%c0_19, %c3_20] : memref<1x10xf32, #tpu.memory_space<smem>>
    %23 = vector.broadcast %22 : f32 to vector<8x128xf32>
    %24 = arith.mulf %23, %21 : vector<8x128xf32>
    %25 = arith.addf %19, %24 : vector<8x128xf32>
    %c0_21 = arith.constant 0 : index
    %c4 = arith.constant 4 : index
    %c0_22 = arith.constant 0 : index
    %c0_23 = arith.constant 0 : index
    %26 = vector.load %arg4[%c0_21, %c4, %c0_22, %c0_23] : memref<1x10x8x128xf32, #tpu.memory_space<vmem>>, vector<1x1x8x128xf32>
    %27 = vector.shape_cast %26 : vector<1x1x8x128xf32> to vector<8x128xf32>
    %c0_24 = arith.constant 0 : index
    %c4_25 = arith.constant 4 : index
    %28 = memref.load %arg3[%c0_24, %c4_25] : memref<1x10xf32, #tpu.memory_space<smem>>
    %29 = vector.broadcast %28 : f32 to vector<8x128xf32>
    %30 = arith.mulf %29, %27 : vector<8x128xf32>
    %31 = arith.addf %25, %30 : vector<8x128xf32>
    %c0_26 = arith.constant 0 : index
    %c5 = arith.constant 5 : index
    %c0_27 = arith.constant 0 : index
    %c0_28 = arith.constant 0 : index
    %32 = vector.load %arg4[%c0_26, %c5, %c0_27, %c0_28] : memref<1x10x8x128xf32, #tpu.memory_space<vmem>>, vector<1x1x8x128xf32>
    %33 = vector.shape_cast %32 : vector<1x1x8x128xf32> to vector<8x128xf32>
    %c0_29 = arith.constant 0 : index
    %c5_30 = arith.constant 5 : index
    %34 = memref.load %arg3[%c0_29, %c5_30] : memref<1x10xf32, #tpu.memory_space<smem>>
    %35 = vector.broadcast %34 : f32 to vector<8x128xf32>
    %36 = arith.mulf %35, %33 : vector<8x128xf32>
    %37 = arith.addf %31, %36 : vector<8x128xf32>
    %c0_31 = arith.constant 0 : index
    %c6 = arith.constant 6 : index
    %c0_32 = arith.constant 0 : index
    %c0_33 = arith.constant 0 : index
    %38 = vector.load %arg4[%c0_31, %c6, %c0_32, %c0_33] : memref<1x10x8x128xf32, #tpu.memory_space<vmem>>, vector<1x1x8x128xf32>
    %39 = vector.shape_cast %38 : vector<1x1x8x128xf32> to vector<8x128xf32>
    %c0_34 = arith.constant 0 : index
    %c6_35 = arith.constant 6 : index
    %40 = memref.load %arg3[%c0_34, %c6_35] : memref<1x10xf32, #tpu.memory_space<smem>>
    %41 = vector.broadcast %40 : f32 to vector<8x128xf32>
    %42 = arith.mulf %41, %39 : vector<8x128xf32>
    %43 = arith.addf %37, %42 : vector<8x128xf32>
    %c0_36 = arith.constant 0 : index
    %c7 = arith.constant 7 : index
    %c0_37 = arith.constant 0 : index
    %c0_38 = arith.constant 0 : index
    %44 = vector.load %arg4[%c0_36, %c7, %c0_37, %c0_38] : memref<1x10x8x128xf32, #tpu.memory_space<vmem>>, vector<1x1x8x128xf32>
    %45 = vector.shape_cast %44 : vector<1x1x8x128xf32> to vector<8x128xf32>
    %c0_39 = arith.constant 0 : index
    %c7_40 = arith.constant 7 : index
    %46 = memref.load %arg3[%c0_39, %c7_40] : memref<1x10xf32, #tpu.memory_space<smem>>
    %47 = vector.broadcast %46 : f32 to vector<8x128xf32>
    %48 = arith.mulf %47, %45 : vector<8x128xf32>
    %49 = arith.addf %43, %48 : vector<8x128xf32>
    %c0_41 = arith.constant 0 : index
    %c8 = arith.constant 8 : index
    %c0_42 = arith.constant 0 : index
    %c0_43 = arith.constant 0 : index
    %50 = vector.load %arg4[%c0_41, %c8, %c0_42, %c0_43] : memref<1x10x8x128xf32, #tpu.memory_space<vmem>>, vector<1x1x8x128xf32>
    %51 = vector.shape_cast %50 : vector<1x1x8x128xf32> to vector<8x128xf32>
    %c0_44 = arith.constant 0 : index
    %c8_45 = arith.constant 8 : index
    %52 = memref.load %arg3[%c0_44, %c8_45] : memref<1x10xf32, #tpu.memory_space<smem>>
    %53 = vector.broadcast %52 : f32 to vector<8x128xf32>
    %54 = arith.mulf %53, %51 : vector<8x128xf32>
    %55 = arith.addf %49, %54 : vector<8x128xf32>
    %c0_46 = arith.constant 0 : index
    %c9 = arith.constant 9 : index
    %c0_47 = arith.constant 0 : index
    %c0_48 = arith.constant 0 : index
    %56 = vector.load %arg4[%c0_46, %c9, %c0_47, %c0_48] : memref<1x10x8x128xf32, #tpu.memory_space<vmem>>, vector<1x1x8x128xf32>
    %57 = vector.shape_cast %56 : vector<1x1x8x128xf32> to vector<8x128xf32>
    %c0_49 = arith.constant 0 : index
    %c9_50 = arith.constant 9 : index
    %58 = memref.load %arg3[%c0_49, %c9_50] : memref<1x10xf32, #tpu.memory_space<smem>>
    %59 = vector.broadcast %58 : f32 to vector<8x128xf32>
    %60 = arith.mulf %59, %57 : vector<8x128xf32>
    %61 = arith.addf %55, %60 : vector<8x128xf32>
    %c0_51 = arith.constant 0 : index
    %c0_52 = arith.constant 0 : index
    %c0_53 = arith.constant 0 : index
    %c0_54 = arith.constant 0 : index
    %62 = vector.load %arg5[%c0_51, %c0_52, %c0_53, %c0_54] : memref<1x1x8x128xf32, #tpu.memory_space<vmem>>, vector<1x1x8x128xf32>
    %63 = vector.shape_cast %62 : vector<1x1x8x128xf32> to vector<8x128xf32>
    %64 = arith.subf %61, %63 : vector<8x128xf32>
    %c0_55 = arith.constant 0 : index
    %c0_56 = arith.constant 0 : index
    %c0_57 = arith.constant 0 : index
    %65 = vector.load %arg7[%c0_55, %c0_56, %c0_57] : memref<1x8x128xf32, #tpu.memory_space<vmem>>, vector<1x8x128xf32>
    %66 = vector.shape_cast %65 : vector<1x8x128xf32> to vector<8x128xf32>
    %67 = arith.mulf %64, %64 : vector<8x128xf32>
    %cst = arith.constant 4.8828125E-4 : f32
    %68 = vector.broadcast %cst : f32 to vector<8x128xf32>
    %69 = arith.mulf %67, %68 : vector<8x128xf32>
    %70 = arith.addf %66, %69 : vector<8x128xf32>
    %c0_58 = arith.constant 0 : index
    %c0_59 = arith.constant 0 : index
    %c0_60 = arith.constant 0 : index
    %71 = vector.load %arg7[%c0_58, %c0_59, %c0_60] : memref<1x8x128xf32, #tpu.memory_space<vmem>>, vector<1x8x128xf32>
    %72 = vector.shape_cast %71 : vector<1x8x128xf32> to vector<8x128xf32>
    %73 = vector.shape_cast %70 : vector<8x128xf32> to vector<1x8x128xf32>
    tpu.vector_store %arg7[%c0_58, %c0_59, %c0_60], %73 {strides = array<i32>} : memref<1x8x128xf32, #tpu.memory_space<vmem>>, vector<1x8x128xf32>,
    %c0_i32_61 = arith.constant 0 : i32
    %74 = arith.cmpi eq, %arg2, %c0_i32_61 : i32
    %75 = arith.extui %74 : i1 to i32
    %c0_i32_62 = arith.constant 0 : i32
    %76 = arith.cmpi ne, %75, %c0_i32_62 : i32
    scf.if %76 {
      %c0_63 = arith.constant 0 : index
      %c0_64 = arith.constant 0 : index
      %c0_65 = arith.constant 0 : index
      %77 = vector.load %arg7[%c0_63, %c0_64, %c0_65] : memref<1x8x128xf32, #tpu.memory_space<vmem>>, vector<1x8x128xf32>
      %78 = vector.shape_cast %77 : vector<1x8x128xf32> to vector<1x1x8x128xf32>
      %cst_66 = arith.constant dense<0.000000e+00> : vector<1xf32>
      %79 = vector.multi_reduction <add>, %78, %cst_66 [1, 2, 3] : vector<1x1x8x128xf32> to vector<1xf32>
      %80 = vector.shape_cast %79 : vector<1xf32> to vector<1x1x1x1xf32>
      %81 = vector.extract %80[0, 0, 0, 0] : f32 from vector<1x1x1x1xf32>
      %82 = vector.broadcast %81 : f32 to vector<1x1x1x1xf32>
      %c0_67 = arith.constant 0 : index
      %c0_68 = arith.constant 0 : index
      %c0_69 = arith.constant 0 : index
      %c0_70 = arith.constant 0 : index
      %83 = vector.load %arg6[%c0_67, %c0_68, %c0_69, %c0_70] : memref<1x1x1x1xf32, #tpu.memory_space<vmem>>, vector<1x1x1x1xf32>
      tpu.vector_store %arg6[%c0_67, %c0_68, %c0_69, %c0_70], %82 {strides = array<i32>} : memref<1x1x1x1xf32, #tpu.memory_space<vmem>>, vector<1x1x1x1xf32>,
    } else {
    }
    return
  }
  func.func @transform_0(%arg0: i32, %arg1: i32, %arg2: i32) -> (i32, i32) {
    %c0_i32 = arith.constant 0 : i32
    %c0_i32_0 = arith.constant 0 : i32
    %c0_i32_1 = arith.constant 0 : i32
    return %c0_i32, %c0_i32_0 : i32, i32
  }
  func.func @transform_1(%arg0: i32, %arg1: i32, %arg2: i32) -> (i32, i32, i32, i32) {
    %c1_i32 = arith.constant 1 : i32
    %0 = arith.muli %arg1, %c1_i32 : i32
    %1 = arith.addi %0, %arg2 : i32
    %c0_i32 = arith.constant 0 : i32
    %c0_i32_0 = arith.constant 0 : i32
    %c0_i32_1 = arith.constant 0 : i32
    return %arg0, %c0_i32, %1, %c0_i32_0 : i32, i32, i32, i32
  }
  func.func @transform_2(%arg0: i32, %arg1: i32, %arg2: i32) -> (i32, i32, i32, i32) {
    %c1_i32 = arith.constant 1 : i32
    %0 = arith.muli %arg1, %c1_i32 : i32
    %1 = arith.addi %0, %arg2 : i32
    %c0_i32 = arith.constant 0 : i32
    %c0_i32_0 = arith.constant 0 : i32
    %c0_i32_1 = arith.constant 0 : i32
    return %arg0, %c0_i32, %1, %c0_i32_0 : i32, i32, i32, i32
  }
  func.func @transform_3(%arg0: i32, %arg1: i32, %arg2: i32) -> (i32, i32, i32, i32) {
    %c0_i32 = arith.constant 0 : i32
    %c0_i32_0 = arith.constant 0 : i32
    %c0_i32_1 = arith.constant 0 : i32
    return %arg0, %arg1, %c0_i32, %c0_i32_0 : i32, i32, i32, i32
  }
}

</mosaic_0001>

<llo_original>
// kernel: tpu_custom_call.1
$region0: #{tpu_custom_call.1}
  #allocation0 [shape = 'u32[]', space=smem, size = 0x4, offset = 0x4, fixed_abs, tag = 'smem constant byte address 0x4 - core index']
  #allocation1 [shape = 'u32[72,128]{1,0:T(1,128)}', space=vmem, size = 0x9000, scoped, tag = 'internal scratch']
  #allocation2 [shape = 'f32[1,8,128]{2,1,0:T(8,128)}', space=vmem, size = 0x1000, scoped, tag = 'scratch operand']
  %s0 = inlined_call_operand.hbm [shape: f32[1,10], index: 0, kind: input, shape index: {}]
  %s1 = inlined_call_operand.hbm [shape: f32[2,10,8,128], index: 1, kind: input, shape index: {}]
  %s2 = inlined_call_operand.hbm [shape: f32[2,1,8,128], index: 2, kind: input, shape index: {}]
  %s3 = inlined_call_operand.vmem [shape: f32[2,1,1,1], index: 3, kind: output, shape index: {}]
  %s4 = sld [smem:[#allocation0]]
  $region65: #{tpu_custom_call.1} parent=0
    _
  %s6 = ssub.s32 1, %s4
  %s7 = scalar_select 0, %s6, %s4
  $region1: #{tpu_custom_call.1} parent=0
    #allocation3 [shape = 'u8[512]{0}', space=smem, size = 0x200, scoped, tag = 'input window, operand 0, single buffered']
    #allocation4 [shape = 's32[2]{0}', space=sflag, size = 0x8, scoped, tag = 'scoped memory for tpu_custom_call.1']
    #allocation5 [shape = 's32[2]{0}', space=sflag, size = 0x8, scoped, tag = 'scoped memory for tpu_custom_call.1']
    #allocation6 [shape = 'u8[81920]{0}', space=vmem, size = 0x14000, scoped, tag = 'input window, operand 1']
    #allocation7 [shape = 'u8[8192]{0}', space=vmem, size = 0x2000, scoped, tag = 'input window, operand 2']
    #allocation8 [shape = 's32[2]{0}', space=sflag, size = 0x8, scoped, tag = 'scoped memory for tpu_custom_call.1']
    %8 = vsyncpa [#allocation5], 0
    %9 = vsyncpa [#allocation4], 0
    %s10 = scalar_lea.sflag [#allocation4], 1
    %11 = vsyncpa %s10, 0
    %12 = vsyncpa [#allocation8], 0
    %s13 = scalar_lea.sflag [#allocation8], 1
    %14 = vsyncpa %s13, 0
    loop: start=0, step=1, limit=4
    $region2: #{tpu_custom_call.1} parent=1 // loop_pre_header
      _
    $region3: #{tpu_custom_call.1} parent=1 // loop_header
      %s16 = sphi 0, %s20
      %p17 = scmp.ge.s32.totalorder %s16, 4
      %s23 = sphi 0, %s42
      %s24 = sphi 0, %s38
      %s25 = sphi 0, %s34
      %s26 = sphi 0, %s23
      %s27 = sphi 0, %s24
      %s28 = sphi 0, %s25
      %s29 = sphi 0, %s26
      %s30 = sphi 0, %s27
      %s31 = sphi 0, %s28
      %s43 = sphi 0, %s43
      %s45 = sphi 0, %s43
      %s46 = sphi 0, %s45
      %s60 = sphi 0, %s46
      %s70 = sphi 0, %s72
      %s73 = sphi 0, %s70
      %s74 = sphi 0, %s73
      %s90 = sphi 0, %s74
      %s100 = sphi 0, %s102
      %s103 = sphi 0, %s100
      %s104 = sphi 0, %s103
      %s120 = sphi 0, %s104
      %s128 = sphi 0, %s130
      %s131 = sphi 0, %s128
      %s132 = sphi 0, %s131
      %s148 = sphi 0, %s132
    $region4: #{tpu_custom_call.1} parent=1 // loop_header_branch
      %19 = sbr.rel (%p17) target = $region8
    $region5: #{tpu_custom_call.1} parent=1 // loop_body
      %s21 = ssub.s32 %s16, 1
      %s22 = ssub.s32 %s16, 2
      %s32 = sadd.s32 1, %s25
      %p33 = scmp.ge.s32.totalorder %s32, 1
      %s34 = scalar_select %p33, 0, %s32
      %s35 = sadd.s32 1, %s24
      %s36 = scalar_select %p33, %s35, %s24
      %p37 = scmp.ge.s32.totalorder %s36, 1
      %s38 = scalar_select %p37, 0, %s36
      %s39 = sadd.s32 1, %s23
      %s40 = scalar_select %p37, %s39, %s23
      %p41 = scmp.ge.s32.totalorder %s40, 2
      %s42 = scalar_select %p41, 0, %s40
      %s44 = sadd.s32 %s43, 1
      %p47 = scmp.eq.s32.totalorder %s16, 1
      %p48 = scmp.ne.s32.totalorder %s43, %s45
      %p49 = scmp.eq.s32.totalorder %s16, 0
      %p50 = por %p48, %p49
      %p51 = scmp.ne.s32.totalorder %s43, %s45
      %p52 = scmp.eq.s32.totalorder %s21, 1
      %p53 = por %p51, %p52
      %p54 = scmp.ne.s32.totalorder %s45, %s46
      %p55 = scmp.eq.s32.totalorder %s21, 0
      %p56 = por %p54, %p55
      %p57 = scmp.ne.s32.totalorder %s45, %s46
      %p58 = scmp.eq.s32.totalorder %s22, 1
      %p59 = por %p57, %p58
      %p61 = scmp.ne.s32.totalorder %s46, %s60
      %p62 = scmp.eq.s32.totalorder %s22, 0
      %p63 = por %p61, %p62
      %s64 = sadd.s32 %s24, %s25
      %s65 = sadd.s32 %s38, %s34
      %s66 = ssub.s32 %s23, %s42
      %s67 = ssub.s32 %s64, %s65
      %s68 = sor.u32 %s66, %s67
      %p69 = scmp.eq.s32.totalorder %s68, 0
      %s71 = sadd.s32 %s70, 1
      %s72 = scalar_select %p69, %s70, %s71
      %p75 = pneg %p69
      %p76 = scmp.eq.s32.totalorder %s16, 1
      %p77 = por %p75, %p76
      %p78 = scmp.ne.s32.totalorder %s70, %s73
      %p79 = scmp.eq.s32.totalorder %s16, 0
      %p80 = por %p78, %p79
      %p81 = scmp.ne.s32.totalorder %s70, %s73
      %p82 = scmp.eq.s32.totalorder %s21, 1
      %p83 = por %p81, %p82
      %p84 = scmp.ne.s32.totalorder %s73, %s74
      %p85 = scmp.eq.s32.totalorder %s21, 0
      %p86 = por %p84, %p85
      %p87 = scmp.ne.s32.totalorder %s73, %s74
      %p88 = scmp.eq.s32.totalorder %s22, 1
      %p89 = por %p87, %p88
      %p91 = scmp.ne.s32.totalorder %s74, %s90
      %p92 = scmp.eq.s32.totalorder %s22, 0
      %p93 = por %p91, %p92
      %s94 = sadd.s32 %s24, %s25
      %s95 = sadd.s32 %s38, %s34
      %s96 = ssub.s32 %s23, %s42
      %s97 = ssub.s32 %s94, %s95
      %s98 = sor.u32 %s96, %s97
      %p99 = scmp.eq.s32.totalorder %s98, 0
      %s101 = sadd.s32 %s100, 1
      %s102 = scalar_select %p99, %s100, %s101
      %p105 = pneg %p99
      %p106 = scmp.eq.s32.totalorder %s16, 1
      %p107 = por %p105, %p106
      %p108 = scmp.ne.s32.totalorder %s100, %s103
      %p109 = scmp.eq.s32.totalorder %s16, 0
      %p110 = por %p108, %p109
      %p111 = scmp.ne.s32.totalorder %s100, %s103
      %p112 = scmp.eq.s32.totalorder %s21, 1
      %p113 = por %p111, %p112
      %p114 = scmp.ne.s32.totalorder %s103, %s104
      %p115 = scmp.eq.s32.totalorder %s21, 0
      %p116 = por %p114, %p115
      %p117 = scmp.ne.s32.totalorder %s103, %s104
      %p118 = scmp.eq.s32.totalorder %s22, 1
      %p119 = por %p117, %p118
      %p121 = scmp.ne.s32.totalorder %s104, %s120
      %p122 = scmp.eq.s32.totalorder %s22, 0
      %p123 = por %p121, %p122
      %s124 = ssub.s32 %s23, %s42
      %s125 = ssub.s32 %s24, %s38
      %s126 = sor.u32 %s124, %s125
      %p127 = scmp.eq.s32.totalorder %s126, 0
      %s129 = sadd.s32 %s128, 1
      %s130 = scalar_select %p127, %s128, %s129
      %p133 = pneg %p127
      %p134 = scmp.eq.s32.totalorder %s16, 1
      %p135 = por %p133, %p134
      %p136 = scmp.ne.s32.totalorder %s128, %s131
      %p137 = scmp.eq.s32.totalorder %s16, 0
      %p138 = por %p136, %p137
      %p139 = scmp.ne.s32.totalorder %s128, %s131
      %p140 = scmp.eq.s32.totalorder %s21, 1
      %p141 = por %p139, %p140
      %p142 = scmp.ne.s32.totalorder %s131, %s132
      %p143 = scmp.eq.s32.totalorder %s21, 0
      %p144 = por %p142, %p143
      %p145 = scmp.ne.s32.totalorder %s131, %s132
      %p146 = scmp.eq.s32.totalorder %s22, 1
      %p147 = por %p145, %p146
      %p149 = scmp.ne.s32.totalorder %s132, %s148
      %p150 = scmp.eq.s32.totalorder %s22, 0
      %p151 = por %p149, %p150
      %p152 = scmp.le.s32.totalorder 1, %s16
      %p153 = scmp.lt.s32.totalorder %s16, 3
      %p154 = pnand %p152, %p153
      %p155 = pneg %p154
      // Predicated region
      $region9: #{tpu_custom_call.1} parent=5 // pred_check
        _
      $region10: #{tpu_custom_call.1} parent=5 // pred_check_branch
        %157 = sbr.rel (%p154) target = $region12
      $region11: #{tpu_custom_call.1} parent=5 // pred_region
        %s158 = ssub.s32 %s16, 1
        // Predicated region
        $region13: #{tpu_custom_call.1} parent=11 // pred_check
          %p159 = pneg %p56
        $region14: #{tpu_custom_call.1} parent=11 // pred_check_branch
          %161 = sbr.rel (%p159) target = $region16
        $region15: #{tpu_custom_call.1} parent=11 // pred_region
          %163 = vsyncadd [#allocation5], 0
          %s165 = sshll.u32 %s0, 4
          %s166 = int_to_ptr.hbm [resolvable:$true] %s165
          %168 = dma.hbm_to_smem %s166, 16, [#allocation3], [#allocation5]
        $region16: #{tpu_custom_call.1} parent=11 // pred_fallthru
          _
      $region12: #{tpu_custom_call.1} parent=5 // pred_fallthru
        _
      %p169 = scmp.lt.s32.totalorder %s16, 2
      // Predicated region
      $region17: #{tpu_custom_call.1} parent=5 // pred_check
        %p170 = pneg %p169
      $region18: #{tpu_custom_call.1} parent=5 // pred_check_branch
        %172 = sbr.rel (%p170) target = $region20
      $region19: #{tpu_custom_call.1} parent=5 // pred_region
        // Predicated region
        $region21: #{tpu_custom_call.1} parent=19 // pred_check
          %p173 = pneg %p80
        $region22: #{tpu_custom_call.1} parent=19 // pred_check_branch
          %175 = sbr.rel (%p173) target = $region24
        $region23: #{tpu_custom_call.1} parent=19 // pred_region
          %s176 = sand.u32 %s70, 1
          %s177 = scalar_lea.sflag [#allocation4], %s176
          %s178 = sand.u32 %s70, 1
          %s179 = smul.addr %s178, 80
          %s180 = scalar_lea.vmem [#allocation6], %s179
          %s181 = sadd.s32 %s24, %s25
          %183 = vsyncadd %s177, 0
          %s184 = smul.addr %s23, 10
          %s185 = sadd.s32 %s181, %s184
          %s186 = smul.addr %s185, 8
          %s187 = scalar_lea.hbm %s1, %s186
          %s188 = sshll.u32 %s187, 4
          %s189 = int_to_ptr.hbm [resolvable:$true] %s188
          %s190 = sshll.u32 %s180, 4
          %s191 = int_to_ptr.vmem [resolvable:$true] %s190
          %196 = dma.hbm_to_vmem [thread:$0]  %s189, 1280, %s191, %s177, 128, 128, 8
        $region24: #{tpu_custom_call.1} parent=19 // pred_fallthru
          _
        // Predicated region
        $region25: #{tpu_custom_call.1} parent=19 // pred_check
          %p197 = pneg %p110
        $region26: #{tpu_custom_call.1} parent=19 // pred_check_branch
          %199 = sbr.rel (%p197) target = $region28
        $region27: #{tpu_custom_call.1} parent=19 // pred_region
          %s200 = sand.u32 %s100, 1
          %s201 = scalar_lea.sflag [#allocation8], %s200
          %s202 = sand.u32 %s100, 1
          %s203 = smul.addr %s202, 8
          %s204 = scalar_lea.vmem [#allocation7], %s203
          %s205 = sadd.s32 %s24, %s25
          %207 = vsyncadd %s201, 0
          %s208 = sadd.s32 %s205, %s23
          %s209 = smul.addr %s208, 8
          %s210 = scalar_lea.hbm %s2, %s209
          %s212 = sshll.u32 %s210, 4
          %s213 = int_to_ptr.hbm [resolvable:$true] %s212
          %s214 = sshll.u32 %s204, 4
          %s215 = int_to_ptr.vmem [resolvable:$true] %s214
          %217 = dma.hbm_to_vmem [thread:$0]  %s213, 128, %s215, %s201
        $region28: #{tpu_custom_call.1} parent=19 // pred_fallthru
          _
      $region20: #{tpu_custom_call.1} parent=5 // pred_fallthru
        _
      %p218 = scmp.le.s32.totalorder 1, %s16
      %p219 = scmp.lt.s32.totalorder %s16, 3
      %p220 = pnand %p218, %p219
      %p221 = pneg %p220
      // Predicated region
      $region29: #{tpu_custom_call.1} parent=5 // pred_check
        _
      $region30: #{tpu_custom_call.1} parent=5 // pred_check_branch
        %223 = sbr.rel (%p220) target = $region32
      $region31: #{tpu_custom_call.1} parent=5 // pred_region
        %s224 = ssub.s32 %s16, 1
        // Predicated region
        $region33: #{tpu_custom_call.1} parent=31 // pred_check
          %p225 = pneg %p56
        $region34: #{tpu_custom_call.1} parent=31 // pred_check_branch
          %227 = sbr.rel (%p225) target = $region36
        $region35: #{tpu_custom_call.1} parent=31 // pred_region
          %229 = dma.done [#allocation5], 16
        $region36: #{tpu_custom_call.1} parent=31 // pred_fallthru
          _
        %s230 = sand.u32 %s73, 1
        %s231 = scalar_lea.sflag [#allocation4], %s230
        %s232 = sand.u32 %s73, 1
        %s233 = smul.addr %s232, 80
        %s234 = scalar_lea.vmem [#allocation6], %s233
        // Predicated region
        $region37: #{tpu_custom_call.1} parent=31 // pred_check
          %p235 = pneg %p86
        $region38: #{tpu_custom_call.1} parent=31 // pred_check_branch
          %237 = sbr.rel (%p235) target = $region40
        $region39: #{tpu_custom_call.1} parent=31 // pred_region
          %239 = dma.done %s231, 1280
        $region40: #{tpu_custom_call.1} parent=31 // pred_fallthru
          _
        %s240 = sand.u32 %s103, 1
        %s241 = scalar_lea.sflag [#allocation8], %s240
        %s242 = sand.u32 %s103, 1
        %s243 = smul.addr %s242, 8
        %s244 = scalar_lea.vmem [#allocation7], %s243
        // Predicated region
        $region41: #{tpu_custom_call.1} parent=31 // pred_check
          %p245 = pneg %p116
        $region42: #{tpu_custom_call.1} parent=31 // pred_check_branch
          %247 = sbr.rel (%p245) target = $region44
        $region43: #{tpu_custom_call.1} parent=31 // pred_region
          %249 = dma.done %s241, 128
        $region44: #{tpu_custom_call.1} parent=31 // pred_fallthru
          _
        %250 = sfence
        %p251 = pneg %p56
        %p252 = pneg %p53
        %s253 = sand.u32 %s73, 1
        %s254 = scalar_lea.sflag [#allocation4], %s253
        %s255 = sand.u32 %s73, 1
        %s256 = smul.addr %s255, 80
        %s257 = scalar_lea.vmem [#allocation6], %s256
        %p258 = pneg %p86
        %p259 = pneg %p83
        %s260 = sand.u32 %s103, 1
        %s261 = scalar_lea.sflag [#allocation8], %s260
        %s262 = sand.u32 %s103, 1
        %s263 = smul.addr %s262, 8
        %s264 = scalar_lea.vmem [#allocation7], %s263
        %p265 = pneg %p116
        %p266 = pneg %p113
        %p267 = pneg %p144
        %p268 = pneg %p141
        %p269 = scmp.lt.s32.totalorder %s26, 1
        %s270 = scalar_select %p269, %s26, 1
        %p271 = scmp.lt.s32.totalorder %s27, 0
        %s272 = scalar_select %p271, %s27, 0
        %s273 = sadd.s32 %s272, %s270
        %s274 = scalar_lea.vmem %s3, %s273
        %s275 = sadd.s32 %s27, %s28
        %s276 = sadd.s32 %s27, %s28
        %p277 = scmp.lt.s32.totalorder %s26, 1
        %s278 = scalar_select %p277, %s26, 1
        %p279 = scmp.lt.s32.totalorder %s27, 0
        %s280 = scalar_select %p279, %s27, 0
        %s281 = sadd.s32 %s280, %s278
        %s282 = scalar_lea.vmem %s3, %s281
        %p283 = scmp.eq.s32.totalorder %s28, 0
        // Predicated region
        $region45: #{tpu_custom_call.1} parent=31 // pred_check
          %p284 = pneg %p283
        $region46: #{tpu_custom_call.1} parent=31 // pred_check_branch
          %286 = sbr.rel (%p284) target = $region48
        $region47: #{tpu_custom_call.1} parent=31 // pred_region
          %287 = vst [vmem:[#allocation2] sm:$0xff] 0.0
        $region48: #{tpu_custom_call.1} parent=31 // pred_fallthru
          _
        %v288 = vld [vmem:[%s234] sm:$0xff]
        %s289 = sld [smem:[#allocation3]]
        %v290 = vstv %s289
        %v291 = vmul.f32 %v290, %v288
        %s292 = scalar_lea.vmem %s234, 8 [#allocation6]
        %v293 = vld [vmem:[%s292] sm:$0xff]
        %s294 = sld [smem:[#allocation3 + $0x1]]
        %v295 = vstv %s294
        %v296 = vmul.f32 %v295, %v293
        %v297 = vadd.f32 %v291, %v296
        %s298 = scalar_lea.vmem %s234, 16 [#allocation6]
        %v299 = vld [vmem:[%s298] sm:$0xff]
        %s300 = sld [smem:[#allocation3 + $0x2]]
        %v301 = vstv %s300
        %v302 = vmul.f32 %v301, %v299
        %v303 = vadd.f32 %v297, %v302
        %s304 = scalar_lea.vmem %s234, 24 [#allocation6]
        %v305 = vld [vmem:[%s304] sm:$0xff]
        %s306 = sld [smem:[#allocation3 + $0x3]]
        %v307 = vstv %s306
        %v308 = vmul.f32 %v307, %v305
        %v309 = vadd.f32 %v303, %v308
        %s310 = scalar_lea.vmem %s234, 32 [#allocation6]
        %v311 = vld [vmem:[%s310] sm:$0xff]
        %s312 = sld [smem:[#allocation3 + $0x4]]
        %v313 = vstv %s312
        %v314 = vmul.f32 %v313, %v311
        %v315 = vadd.f32 %v309, %v314
        %s316 = scalar_lea.vmem %s234, 40 [#allocation6]
        %v317 = vld [vmem:[%s316] sm:$0xff]
        %s318 = sld [smem:[#allocation3 + $0x5]]
        %v319 = vstv %s318
        %v320 = vmul.f32 %v319, %v317
        %v321 = vadd.f32 %v315, %v320
        %s322 = scalar_lea.vmem %s234, 48 [#allocation6]
        %v323 = vld [vmem:[%s322] sm:$0xff]
        %s324 = sld [smem:[#allocation3 + $0x6]]
        %v325 = vstv %s324
        %v326 = vmul.f32 %v325, %v323
        %v327 = vadd.f32 %v321, %v326
        %s328 = scalar_lea.vmem %s234, 56 [#allocation6]
        %v329 = vld [vmem:[%s328] sm:$0xff]
        %s330 = sld [smem:[#allocation3 + $0x7]]
        %v331 = vstv %s330
        %v332 = vmul.f32 %v331, %v329
        %v333 = vadd.f32 %v327, %v332
        %s334 = scalar_lea.vmem %s234, 64 [#allocation6]
        %v335 = vld [vmem:[%s334] sm:$0xff]
        %s336 = sld [smem:[#allocation3 + $0x8]]
        %v337 = vstv %s336
        %v338 = vmul.f32 %v337, %v335
        %v339 = vadd.f32 %v333, %v338
        %s340 = scalar_lea.vmem %s234, 72 [#allocation6]
        %v341 = vld [vmem:[%s340] sm:$0xff]
        %s342 = sld [smem:[#allocation3 + $0x9]]
        %v343 = vstv %s342
        %v344 = vmul.f32 %v343, %v341
        %v345 = vadd.f32 %v339, %v344
        %v346 = vld [vmem:[%s244] sm:$0xff]
        %v347 = vsub.f32 %v345, %v346
        %v348 = vld [vmem:[#allocation2] sm:$0xff]
        %v349 = vmul.f32 %v347, %v347
        %v350 = vmul.f32 %v349, 0.00048828125
        %v351 = vadd.f32 %v348, %v350
        %352 = vst [vmem:[#allocation2] sm:$0xff] %v351
        // Predicated region
        $region49: #{tpu_custom_call.1} parent=31 // pred_check
          %p353 = pneg %p283
        $region50: #{tpu_custom_call.1} parent=31 // pred_check_branch
          %355 = sbr.rel (%p353) target = $region52
        $region51: #{tpu_custom_call.1} parent=31 // pred_region
          %v356 = vld [vmem:[#allocation2] sm:$0xff]
          %357 = vadd.xlane.f32.xlu0 %v356
          %v358 = vpop.xlane.xlu0 %357
          %v359 = vrot.slane %v358, 4
          %v360 = vadd.f32 %v358, %v359
          %v361 = vrot.slane %v360, 2
          %v362 = vadd.f32 %v360, %v361
          %v363 = vrot.slane %v362, 1
          %v364 = vadd.f32 %v362, %v363
          %s365 = vtos %v364
          %v366 = vstv %s365
          %vm367 = vcmask 0
          %368 = vst.msk [vmem:[%s282] sm:$0x1] %vm367, %v366
        $region52: #{tpu_custom_call.1} parent=31 // pred_fallthru
          _
        %p369 = scmp.lt.s32.totalorder %s26, 1
        %s370 = scalar_select %p369, %s26, 1
        %p371 = scmp.lt.s32.totalorder %s27, 0
        %s372 = scalar_select %p371, %s27, 0
        %s373 = sadd.s32 %s372, %s370
        %s374 = scalar_lea.vmem %s3, %s373
        // Predicated region
        $region53: #{tpu_custom_call.1} parent=31 // pred_check
          %p375 = pneg %p141
        $region54: #{tpu_custom_call.1} parent=31 // pred_check_branch
          %377 = sbr.rel (%p375) target = $region56
        $region55: #{tpu_custom_call.1} parent=31 // pred_region
          _
        $region56: #{tpu_custom_call.1} parent=31 // pred_fallthru
          _
      $region32: #{tpu_custom_call.1} parent=5 // pred_fallthru
        _
      %p378 = scmp.le.s32.totalorder 2, %s16
      // Predicated region
      $region57: #{tpu_custom_call.1} parent=5 // pred_check
        %p379 = pneg %p378
      $region58: #{tpu_custom_call.1} parent=5 // pred_check_branch
        %381 = sbr.rel (%p379) target = $region60
      $region59: #{tpu_custom_call.1} parent=5 // pred_region
        %s382 = ssub.s32 %s16, 2
        // Predicated region
        $region61: #{tpu_custom_call.1} parent=59 // pred_check
          %p383 = pneg %p147
        $region62: #{tpu_custom_call.1} parent=59 // pred_check_branch
          %385 = sbr.rel (%p383) target = $region64
        $region63: #{tpu_custom_call.1} parent=59 // pred_region
          %p386 = scmp.lt.s32.totalorder %s29, 1
          %s387 = scalar_select %p386, %s29, 1
          %p388 = scmp.lt.s32.totalorder %s30, 0
          %s389 = scalar_select %p388, %s30, 0
          %s390 = sadd.s32 %s389, %s387
          %s391 = scalar_lea.vmem %s3, %s390
        $region64: #{tpu_custom_call.1} parent=59 // pred_fallthru
          _
      $region60: #{tpu_custom_call.1} parent=5 // pred_fallthru
        _
    $region6: #{tpu_custom_call.1} parent=1 // loop_footer
      %s20 = sadd.s32 1, %s16
    $region7: #{tpu_custom_call.1} parent=1 // loop_footer_branch
      %15 = sbr.rel target = $region3
    $region8: #{tpu_custom_call.1} parent=1 // loop_exit
      _
    %392 = vsyncpa [#allocation4], 1
    %s393 = scalar_lea.sflag [#allocation4], 1
    %394 = vsyncpa %s393, 1
    %395 = vsyncpa [#allocation8], 1
    %s396 = scalar_lea.sflag [#allocation8], 1
    %397 = vsyncpa %s396, 1
    %398 = vsyncpa [#allocation5], 1
    %s399 = scalar_lea.sflag [#allocation5], 1
    %400 = vsyncpa %s399, 1

</llo_original>
